<compile_context>
chip_gen: v7x
topology: tpu7x:2x2x1
jax: 0.10.0
libtpu: 0.0.40
codegen_flags: <defaults>
</compile_context>

<pallas_src>
import math
import functools

import jax
import jax.numpy as jnp
from jax.experimental import pallas as pl
from jax.experimental.pallas import tpu as pltpu


# ----------------------------- tile-size helper -----------------------------
def _pick_tile(dim, max_tile, align):
    """Largest multiple of `align` <= max_tile that divides dim, else the full dim."""
    if dim <= max_tile:
        return dim
    t = (max_tile // align) * align
    while t >= align:
        if dim % t == 0:
            return t
        t -= align
    return dim


# ----------------------------- plain tiled linear: y = x @ W.T -----------------------------
def _linear_kernel(x_ref, w_ref, o_ref, acc_ref):
    @pl.when(pl.program_id(2) == 0)
    def _():
        acc_ref[...] = jnp.zeros(acc_ref.shape, acc_ref.dtype)

    # x: [tm, tk] bf16, w: [tn, tk] bf16 (PyTorch [out, in]) -> contract on K axis of both.
    acc_ref[...] += jax.lax.dot_general(
        x_ref[...], w_ref[...],
        dimension_numbers=(((1,), (1,)), ((), ())),
        preferred_element_type=jnp.float32)

    @pl.when(pl.program_id(2) == pl.num_programs(2) - 1)
    def _():
        o_ref[...] = acc_ref[...].astype(o_ref.dtype)


def linear(x, w, out_dtype=jnp.float32):
    """x: [M, K] bf16, w: [N, K] bf16 (never transposed) -> [M, N] out_dtype."""
    M, K = x.shape
    N, K2 = w.shape
    assert K == K2
    # Larger tiles (512/512/1024) stay well under the default scoped-VMEM limit even when
    # double-buffered, and cut both weight re-streaming and per-grid-step overhead.
    tm = _pick_tile(M, 512, 16)     # 16-aligned: bf16 sublane packing
    tn = _pick_tile(N, 512, 128)
    tk = _pick_tile(K, 1024, 128)
    grid = (M // tm, N // tn, K // tk)
    cost = pl.CostEstimate(
        flops=2 * M * N * K,
        transcendentals=0,
        bytes_accessed=(M * K + N * K) * x.dtype.itemsize
                       + M * N * jnp.dtype(out_dtype).itemsize)
    return pl.pallas_call(
        _linear_kernel,
        out_shape=jax.ShapeDtypeStruct((M, N), out_dtype),
        grid=grid,
        in_specs=[
            pl.BlockSpec((tm, tk), lambda i, j, k: (i, k)),
            pl.BlockSpec((tn, tk), lambda i, j, k: (j, k)),
        ],
        out_specs=pl.BlockSpec((tm, tn), lambda i, j, k: (i, j)),
        scratch_shapes=[pltpu.VMEM((tm, tn), jnp.float32)],
        compiler_params=pltpu.CompilerParams(
            dimension_semantics=("parallel", "parallel", "arbitrary")),
        cost_estimate=cost,
    )(x, w)


# ----------------------------- fused linear + RoPE (q/k projections) -----------------------------
def _linear_rope_kernel(x_ref, w_ref, cos_ref, sin_ref, o_ref, acc_ref, *, head_dim):
    k_idx = pl.program_id(3)

    @pl.when(k_idx == 0)
    def _():
        acc_ref[...] = jnp.zeros(acc_ref.shape, acc_ref.dtype)

    acc_ref[...] += jax.lax.dot_general(
        x_ref[0], w_ref[...],
        dimension_numbers=(((1,), (1,)), ((), ())),
        preferred_element_type=jnp.float32)

    @pl.when(k_idx == pl.num_programs(3) - 1)
    def _():
        # RoPE epilogue on the VMEM-resident f32 accumulator (no extra HBM round trip).
        y = acc_ref[...]                       # [ts, tn] f32, tn = n_heads_in_tile * head_dim
        cos = cos_ref[...]                     # [ts, head_dim] f32 (q: pre-scaled by 1/sqrt(D))
        sin = sin_ref[...]                     # [ts, head_dim] f32
        half = head_dim // 2
        n_heads = y.shape[1] // head_dim
        parts = []
        for hh in range(n_heads):
            yh = y[:, hh * head_dim:(hh + 1) * head_dim]   # one head (128-lane aligned slice)
            x1 = yh[:, :half]
            x2 = yh[:, half:]
            rot = jnp.concatenate([-x2, x1], axis=1)       # rotate_half (exact HF semantics)
            parts.append(yh * cos + rot * sin)
        out = parts[0] if n_heads == 1 else jnp.concatenate(parts, axis=1)
        o_ref[0] = out.astype(o_ref.dtype)


def linear_rope(x, w, cos, sin, head_dim, out_dtype=jnp.bfloat16):
    """x: [B, S, K] bf16, w: [N, K] bf16, cos/sin: [S, head_dim] f32.
    Returns rope_per_head(x @ w.T) as [B, S, N] out_dtype (lane-dense, heads packed on last axis)."""
    B, S, K = x.shape
    N, K2 = w.shape
    assert K == K2 and N % head_dim == 0
    ts = _pick_tile(S, 512, 16)
    tn = _pick_tile(N, 512, head_dim)      # head_dim-aligned so the epilogue slices whole heads
    tk = _pick_tile(K, 1024, 128)
    assert tn % head_dim == 0
    grid = (B, S // ts, N // tn, K // tk)
    kernel = functools.partial(_linear_rope_kernel, head_dim=head_dim)
    cost = pl.CostEstimate(
        flops=2 * B * S * N * K + 6 * B * S * N,
        transcendentals=0,
        bytes_accessed=(B * S * K + N * K) * 2 + 2 * S * head_dim * 4
                       + B * S * N * jnp.dtype(out_dtype).itemsize)
    return pl.pallas_call(
        kernel,
        out_shape=jax.ShapeDtypeStruct((B, S, N), out_dtype),
        grid=grid,
        in_specs=[
            pl.BlockSpec((1, ts, tk), lambda b, si, j, k: (b, si, k)),
            pl.BlockSpec((tn, tk), lambda b, si, j, k: (j, k)),
            pl.BlockSpec((ts, head_dim), lambda b, si, j, k: (si, 0)),
            pl.BlockSpec((ts, head_dim), lambda b, si, j, k: (si, 0)),
        ],
        out_specs=pl.BlockSpec((1, ts, tn), lambda b, si, j, k: (b, si, j)),
        scratch_shapes=[pltpu.VMEM((ts, tn), jnp.float32)],
        compiler_params=pltpu.CompilerParams(
            dimension_semantics=("parallel", "parallel", "parallel", "arbitrary")),
        cost_estimate=cost,
    )(x, w, cos, sin)


# ----------------------------- flash attention (GQA group-blocked, causal) -----------------------------
def _flash_attn_kernel(q_ref, k_ref, v_ref, o_ref, m_sc, l_sc, acc_sc,
                       *, tq, tkv, g, head_dim):
    qi = pl.program_id(2)
    ki = pl.program_id(3)

    @pl.when(ki == 0)
    def _():
        m_sc[...] = jnp.full(m_sc.shape, -jnp.inf, m_sc.dtype)
        l_sc[...] = jnp.zeros(l_sc.shape, l_sc.dtype)
        acc_sc[...] = jnp.zeros(acc_sc.shape, acc_sc.dtype)

    q_start = qi * tq
    k_start = ki * tkv

    def _process(apply_mask):
        q = q_ref[0]    # [tq, g*D]  bf16, RoPE'd, q pre-scaled by 1/sqrt(D)
        k = k_ref[0]    # [tkv, D]   bf16, RoPE'd once per kv head (loaded once per group)
        v = v_ref[0]    # [tkv, D]   bf16
        if apply_mask:
            row = q_start + jax.lax.broadcasted_iota(jnp.int32, (tq, tkv), 0)
            col = k_start + jax.lax.broadcasted_iota(jnp.int32, (tq, tkv), 1)
            keep = row >= col
        for hh in range(g):                                   # all query heads of this kv group
            q_h = q[:, hh * head_dim:(hh + 1) * head_dim]     # [tq, D]
            s = jax.lax.dot_general(
                q_h, k, dimension_numbers=(((1,), (1,)), ((), ())),
                preferred_element_type=jnp.float32)           # [tq, tkv] f32
            if apply_mask:
                s = jnp.where(keep, s, jnp.float32(-1e30))    # finite: avoids inf-inf NaNs
            m_prev = m_sc[hh]
            m_new = jnp.maximum(m_prev, jnp.max(s, axis=-1, keepdims=True))
            alpha = jnp.exp(m_prev - m_new)
            p = jnp.exp(s - m_new)
            l_sc[hh] = alpha * l_sc[hh] + jnp.sum(p, axis=-1, keepdims=True)
            acc_sc[hh] = alpha * acc_sc[hh] + jnp.dot(
                p.astype(v.dtype), v, preferred_element_type=jnp.float32)
            m_sc[hh] = m_new

    # diagonal-straddling kv blocks: need the causal mask
    @pl.when(jnp.logical_and(k_start < q_start + tq, k_start + tkv > q_start + 1))
    def _():
        _process(True)

    # strictly-below-diagonal kv blocks: skip the [tq,tkv] iota/compare/select entirely
    @pl.when(k_start + tkv <= q_start + 1)
    def _():
        _process(False)

    @pl.when(ki == pl.num_programs(3) - 1)
    def _():
        parts = []
        for hh in range(g):
            parts.append(acc_sc[hh] / l_sc[hh])   # exact normalization (matches PyTorch softmax)
        out = parts[0] if g == 1 else jnp.concatenate(parts, axis=1)
        o_ref[0] = out.astype(o_ref.dtype)


def flash_attention(q, k, v, num_heads, num_kv_heads, head_dim):
    """q: [B, S, nH*D] bf16 ; k, v: [B, S, nKV*D] bf16 -> [B, S, nH*D] bf16 (lane-dense)."""
    B, S, _ = q.shape
    assert num_heads % num_kv_heads == 0
    g = num_heads // num_kv_heads
    tq = _pick_tile(S, 256, 16)
    tkv = _pick_tile(S, 512, 128)
    nq = S // tq
    nkv = S // tkv
    kernel = functools.partial(_flash_attn_kernel, tq=tq, tkv=tkv, g=g, head_dim=head_dim)

    def q_map(h, b, qi, ki):
        return (b, qi, h)                     # kv group h -> contiguous g*D feature slab

    def kv_map(h, b, qi, ki):
        # Clamp to the causal limit: kv blocks above the diagonal map to an already-resident
        # block; Pallas dedupes identical consecutive block indices, so they are never re-DMA'd.
        return (b, jnp.minimum(ki, (qi * tq + tq - 1) // tkv), h)

    cost = pl.CostEstimate(
        flops=2 * B * num_heads * S * S * head_dim,          # ~causal half of full attention
        transcendentals=B * num_heads * S * S // 2,
        bytes_accessed=2 * (q.size * 2) + (k.size + v.size) * 2)
    return pl.pallas_call(
        kernel,
        out_shape=jax.ShapeDtypeStruct(q.shape, jnp.bfloat16),
        # kv-head axis first keeps a >=2-wide parallel leading axis even for B=1 (v7x 2 TCs).
        grid=(num_kv_heads, B, nq, nkv),
        in_specs=[
            pl.BlockSpec((1, tq, g * head_dim), q_map),      # whole GQA group of query heads
            pl.BlockSpec((1, tkv, head_dim), kv_map),
            pl.BlockSpec((1, tkv, head_dim), kv_map),
        ],
        out_specs=pl.BlockSpec((1, tq, g * head_dim), q_map),
        scratch_shapes=[
            pltpu.VMEM((g, tq, 1), jnp.float32),             # running max, per head in group
            pltpu.VMEM((g, tq, 1), jnp.float32),             # running sum, per head in group
            pltpu.VMEM((g, tq, head_dim), jnp.float32),      # output accumulator, per head
        ],
        compiler_params=pltpu.CompilerParams(
            dimension_semantics=("parallel", "parallel", "parallel", "arbitrary")),
        cost_estimate=cost,
    )(q, k, v)


# ----------------------------- full module forward -----------------------------
def llama_attention_forward(hidden_states, params_bf16, config):
    """hidden_states: [B, S, hidden] float32 -> attn_output: [B, S, hidden] float32."""
    B, S, H = hidden_states.shape
    nH = config["num_attention_heads"]
    nKV = config["num_key_value_heads"]
    D = H // nH
    theta = config["rope_theta"]

    x3d = hidden_states.astype(jnp.bfloat16)        # [B, S, H]
    x2d = x3d.reshape(B * S, H)

    # RoPE tables (LlamaRotaryEmbedding, rope_scaling=None; position_ids = arange(S))
    inv_freq = 1.0 / (theta ** (jnp.arange(0, D, 2, dtype=jnp.float32) / D))   # [D/2]
    t = jnp.arange(S, dtype=jnp.float32)
    freqs = jnp.einsum("i,j->ij", t, inv_freq)                                  # [S, D/2]
    emb = jnp.concatenate([freqs, freqs], axis=-1)                              # [S, D]
    cos = jnp.cos(emb)
    sin = jnp.sin(emb)
    scale = 1.0 / math.sqrt(D)   # folded into the q RoPE tables (constant [S,D] prep, one-time)

    # projections (nn.Linear, bias=False); q/k fused with RoPE, emitted directly in bf16
    q = linear_rope(x3d, params_bf16["q_proj"], cos * scale, sin * scale, D)   # [B, S, nH*D]
    k = linear_rope(x3d, params_bf16["k_proj"], cos, sin, D)                   # [B, S, nKV*D]
    v = linear(x2d, params_bf16["v_proj"], out_dtype=jnp.bfloat16).reshape(B, S, nKV * D)

    attn = flash_attention(q, k, v, nH, nKV, D)     # [B, S, nH*D] bf16, lane-dense

    out = linear(attn.reshape(B * S, nH * D), params_bf16["o_proj"],
                 out_dtype=jnp.float32)             # [B*S, H]
    return out.reshape(B, S, H)


# ----------------------------- setup & run -----------------------------
if __name__ == "__main__":
    # Small but lane-aligned shapes: head_dim = 128 so per-head blocks are lane-dense.
    config = dict(
        hidden_size=512,
        num_attention_heads=4,
        num_key_value_heads=2,      # GQA: num_key_value_groups = 2
        rope_theta=10000.0,
        max_position_embeddings=2048,
    )
    B, S = 2, 8
    H = config["hidden_size"]
    nH = config["num_attention_heads"]
    nKV = config["num_key_value_heads"]
    D = H // nH                     # 128

    key = jax.random.PRNGKey(0)
    k0, k1, k2, k3, k4 = jax.random.split(key, 5)
    sc = 0.05
    params = {
        "q_proj": sc * jax.random.normal(k1, (nH * D, H), jnp.float32),   # [out, in]
        "k_proj": sc * jax.random.normal(k2, (nKV * D, H), jnp.float32),
        "v_proj": sc * jax.random.normal(k3, (nKV * D, H), jnp.float32),
        "o_proj": sc * jax.random.normal(k4, (H, nH * D), jnp.float32),
    }
    # one-time parameter prep: cast MXU weights to bf16 (layout kept as PyTorch [out, in])
    params_bf16 = {name: w.astype(jnp.bfloat16) for name, w in params.items()}

    hidden_states = jax.random.normal(k0, (B, S, H), jnp.float32)

    out = llama_attention_forward(hidden_states, params_bf16, config)
    out = jax.block_until_ready(out)
    assert out.shape == (B, S, H)
    assert bool(jnp.all(jnp.isfinite(out)))
    print("KERNEL_OK")
</pallas_src>

<mosaic_0001>
module attributes {stable_mosaic.version = 11 : i64} {
  func.func @_linear_rope_kernel(%arg0: i32, %arg1: i32, %arg2: i32, %arg3: i32, %arg4: memref<1x8x512xbf16, #tpu.memory_space<vmem>>, %arg5: memref<512x512xbf16, #tpu.memory_space<vmem>>, %arg6: memref<8x128xf32, #tpu.memory_space<vmem>>, %arg7: memref<8x128xf32, #tpu.memory_space<vmem>>, %arg8: memref<1x8x512xbf16, #tpu.memory_space<vmem>>, %arg9: memref<8x512xf32, #tpu.memory_space<vmem>>) attributes {dimension_semantics = [#tpu.dimension_semantics<parallel>, #tpu.dimension_semantics<parallel>, #tpu.dimension_semantics<parallel>, #tpu.dimension_semantics<arbitrary>], iteration_bounds = array<i64: 2, 1, 1, 1>, scalar_prefetch = 0 : i64, scratch_operands = 1 : i64, tpu.core_type = #tpu.core_type<tc>, window_params = [{transform_indices = @transform_0, window_bounds = array<i64: 1, 8, 512>}, {transform_indices = @transform_1, window_bounds = array<i64: 512, 512>}, {transform_indices = @transform_2, window_bounds = array<i64: 8, 128>}, {transform_indices = @transform_3, window_bounds = array<i64: 8, 128>}, {transform_indices = @transform_4, window_bounds = array<i64: 1, 8, 512>}]} {
    %c0_i32 = arith.constant 0 : i32
    %0 = arith.cmpi eq, %arg3, %c0_i32 : i32
    %1 = arith.extui %0 : i1 to i32
    %c0_i32_0 = arith.constant 0 : i32
    %2 = arith.cmpi ne, %1, %c0_i32_0 : i32
    scf.if %2 {
      %cst_11 = arith.constant 0.000000e+00 : f32
      %13 = vector.broadcast %cst_11 : f32 to vector<8x512xf32>
      %c0_12 = arith.constant 0 : index
      %c0_13 = arith.constant 0 : index
      %14 = vector.load %arg9[%c0_12, %c0_13] : memref<8x512xf32, #tpu.memory_space<vmem>>, vector<8x512xf32>
      tpu.vector_store %arg9[%c0_12, %c0_13], %13 {strides = array<i32>} : memref<8x512xf32, #tpu.memory_space<vmem>>, vector<8x512xf32>,
    } else {
    }
    %c0 = arith.constant 0 : index
    %c0_1 = arith.constant 0 : index
    %3 = vector.load %arg9[%c0, %c0_1] : memref<8x512xf32, #tpu.memory_space<vmem>>, vector<8x512xf32>
    %c0_2 = arith.constant 0 : index
    %c0_3 = arith.constant 0 : index
    %c0_4 = arith.constant 0 : index
    %4 = vector.load %arg4[%c0_2, %c0_3, %c0_4] : memref<1x8x512xbf16, #tpu.memory_space<vmem>>, vector<1x8x512xbf16>
    %5 = vector.shape_cast %4 : vector<1x8x512xbf16> to vector<8x512xbf16>
    %c0_5 = arith.constant 0 : index
    %c0_6 = arith.constant 0 : index
    %6 = vector.load %arg5[%c0_5, %c0_6] : memref<512x512xbf16, #tpu.memory_space<vmem>>, vector<512x512xbf16>
    %cst = arith.constant dense<0.000000e+00> : vector<8x512xf32>
    %7 = tpu.matmul %5, %6, %cst {dimension_numbers = #tpu.dot_dimension_numbers<[1], [1], [0], [0], [0, 0, 1, 0], [], []>} : vector<8x512xbf16>, vector<512x512xbf16>, vector<8x512xf32> -> vector<8x512xf32>
    %8 = arith.addf %3, %7 : vector<8x512xf32>
    %c0_7 = arith.constant 0 : index
    %c0_8 = arith.constant 0 : index
    %9 = vector.load %arg9[%c0_7, %c0_8] : memref<8x512xf32, #tpu.memory_space<vmem>>, vector<8x512xf32>
    tpu.vector_store %arg9[%c0_7, %c0_8], %8 {strides = array<i32>} : memref<8x512xf32, #tpu.memory_space<vmem>>, vector<8x512xf32>,
    %c0_i32_9 = arith.constant 0 : i32
    %10 = arith.cmpi eq, %arg3, %c0_i32_9 : i32
    %11 = arith.extui %10 : i1 to i32
    %c0_i32_10 = arith.constant 0 : i32
    %12 = arith.cmpi ne, %11, %c0_i32_10 : i32
    scf.if %12 {
      %c0_11 = arith.constant 0 : index
      %c0_12 = arith.constant 0 : index
      %13 = vector.load %arg9[%c0_11, %c0_12] : memref<8x512xf32, #tpu.memory_space<vmem>>, vector<8x512xf32>
      %c0_13 = arith.constant 0 : index
      %c0_14 = arith.constant 0 : index
      %14 = vector.load %arg6[%c0_13, %c0_14] : memref<8x128xf32, #tpu.memory_space<vmem>>, vector<8x128xf32>
      %c0_15 = arith.constant 0 : index
      %c0_16 = arith.constant 0 : index
      %15 = vector.load %arg7[%c0_15, %c0_16] : memref<8x128xf32, #tpu.memory_space<vmem>>, vector<8x128xf32>
      %16 = vector.extract_strided_slice %13 {offsets = [0, 0], sizes = [8, 128], strides = [1, 1]} : vector<8x512xf32> to vector<8x128xf32>
      %17 = vector.extract_strided_slice %16 {offsets = [0, 0], sizes = [8, 64], strides = [1, 1]} : vector<8x128xf32> to vector<8x64xf32>
      %18 = vector.extract_strided_slice %16 {offsets = [0, 64], sizes = [8, 64], strides = [1, 1]} : vector<8x128xf32> to vector<8x64xf32>
      %cst_17 = arith.constant 0.000000e+00 : f32
      %19 = vector.broadcast %cst_17 : f32 to vector<8x64xf32>
      %20 = arith.subf %19, %18 : vector<8x64xf32>
      %21 = tpu.concatenate %20, %17 in 1 : vector<8x64xf32>, vector<8x64xf32> -> vector<8x128xf32>
      %22 = arith.mulf %16, %14 : vector<8x128xf32>
      %23 = arith.mulf %21, %15 : vector<8x128xf32>
      %24 = arith.addf %22, %23 : vector<8x128xf32>
      %25 = vector.extract_strided_slice %13 {offsets = [0, 128], sizes = [8, 128], strides = [1, 1]} : vector<8x512xf32> to vector<8x128xf32>
      %26 = vector.extract_strided_slice %25 {offsets = [0, 0], sizes = [8, 64], strides = [1, 1]} : vector<8x128xf32> to vector<8x64xf32>
      %27 = vector.extract_strided_slice %25 {offsets = [0, 64], sizes = [8, 64], strides = [1, 1]} : vector<8x128xf32> to vector<8x64xf32>
      %cst_18 = arith.constant 0.000000e+00 : f32
      %28 = vector.broadcast %cst_18 : f32 to vector<8x64xf32>
      %29 = arith.subf %28, %27 : vector<8x64xf32>
      %30 = tpu.concatenate %29, %26 in 1 : vector<8x64xf32>, vector<8x64xf32> -> vector<8x128xf32>
      %31 = arith.mulf %25, %14 : vector<8x128xf32>
      %32 = arith.mulf %30, %15 : vector<8x128xf32>
      %33 = arith.addf %31, %32 : vector<8x128xf32>
      %34 = vector.extract_strided_slice %13 {offsets = [0, 256], sizes = [8, 128], strides = [1, 1]} : vector<8x512xf32> to vector<8x128xf32>
      %35 = vector.extract_strided_slice %34 {offsets = [0, 0], sizes = [8, 64], strides = [1, 1]} : vector<8x128xf32> to vector<8x64xf32>
      %36 = vector.extract_strided_slice %34 {offsets = [0, 64], sizes = [8, 64], strides = [1, 1]} : vector<8x128xf32> to vector<8x64xf32>
      %cst_19 = arith.constant 0.000000e+00 : f32
      %37 = vector.broadcast %cst_19 : f32 to vector<8x64xf32>
      %38 = arith.subf %37, %36 : vector<8x64xf32>
      %39 = tpu.concatenate %38, %35 in 1 : vector<8x64xf32>, vector<8x64xf32> -> vector<8x128xf32>
      %40 = arith.mulf %34, %14 : vector<8x128xf32>
      %41 = arith.mulf %39, %15 : vector<8x128xf32>
      %42 = arith.addf %40, %41 : vector<8x128xf32>
      %43 = vector.extract_strided_slice %13 {offsets = [0, 384], sizes = [8, 128], strides = [1, 1]} : vector<8x512xf32> to vector<8x128xf32>
      %44 = vector.extract_strided_slice %43 {offsets = [0, 0], sizes = [8, 64], strides = [1, 1]} : vector<8x128xf32> to vector<8x64xf32>
      %45 = vector.extract_strided_slice %43 {offsets = [0, 64], sizes = [8, 64], strides = [1, 1]} : vector<8x128xf32> to vector<8x64xf32>
      %cst_20 = arith.constant 0.000000e+00 : f32
      %46 = vector.broadcast %cst_20 : f32 to vector<8x64xf32>
      %47 = arith.subf %46, %45 : vector<8x64xf32>
      %48 = tpu.concatenate %47, %44 in 1 : vector<8x64xf32>, vector<8x64xf32> -> vector<8x128xf32>
      %49 = arith.mulf %43, %14 : vector<8x128xf32>
      %50 = arith.mulf %48, %15 : vector<8x128xf32>
      %51 = arith.addf %49, %50 : vector<8x128xf32>
      %52 = tpu.concatenate %24, %33, %42, %51 in 1 : vector<8x128xf32>, vector<8x128xf32>, vector<8x128xf32>, vector<8x128xf32> -> vector<8x512xf32>
      %53 = arith.truncf %52 : vector<8x512xf32> to vector<8x512xbf16>
      %c0_21 = arith.constant 0 : index
      %c0_22 = arith.constant 0 : index
      %c0_23 = arith.constant 0 : index
      %54 = vector.load %arg8[%c0_21, %c0_22, %c0_23] : memref<1x8x512xbf16, #tpu.memory_space<vmem>>, vector<1x8x512xbf16>
      %55 = vector.shape_cast %54 : vector<1x8x512xbf16> to vector<8x512xbf16>
      %56 = vector.shape_cast %53 : vector<8x512xbf16> to vector<1x8x512xbf16>
      tpu.vector_store %arg8[%c0_21, %c0_22, %c0_23], %56 {strides = array<i32>} : memref<1x8x512xbf16, #tpu.memory_space<vmem>>, vector<1x8x512xbf16>,
    } else {
    }
    return
  }
  func.func @transform_0(%arg0: i32, %arg1: i32, %arg2: i32, %arg3: i32) -> (i32, i32, i32) {
    %c0_i32 = arith.constant 0 : i32
    return %arg0, %arg1, %arg3 : i32, i32, i32
  }
  func.func @transform_1(%arg0: i32, %arg1: i32, %arg2: i32, %arg3: i32) -> (i32, i32) {
    %c0_i32 = arith.constant 0 : i32
    return %arg2, %arg3 : i32, i32
  }
  func.func @transform_2(%arg0: i32, %arg1: i32, %arg2: i32, %arg3: i32) -> (i32, i32) {
    %c0_i32 = arith.constant 0 : i32
    %c0_i32_0 = arith.constant 0 : i32
    return %arg1, %c0_i32 : i32, i32
  }
  func.func @transform_3(%arg0: i32, %arg1: i32, %arg2: i32, %arg3: i32) -> (i32, i32) {
    %c0_i32 = arith.constant 0 : i32
    %c0_i32_0 = arith.constant 0 : i32
    return %arg1, %c0_i32 : i32, i32
  }
  func.func @transform_4(%arg0: i32, %arg1: i32, %arg2: i32, %arg3: i32) -> (i32, i32, i32) {
    %c0_i32 = arith.constant 0 : i32
    return %arg0, %arg1, %arg2 : i32, i32, i32
  }
}

</mosaic_0001>

<llo_original>
// kernel: tpu_custom_call.1
$region0: #{tpu_custom_call.1}
  #allocation0 [shape = 'u32[]', space=smem, size = 0x4, offset = 0x4, fixed_abs, tag = 'smem constant byte address 0x4 - core index']
  #allocation1 [shape = 'u32[144,128]{1,0:T(1,128)}', space=vmem, size = 0x12000, scoped, tag = 'internal scratch']
  #allocation2 [shape = 'f32[8,512]{1,0:T(8,128)}', space=vmem, size = 0x4000, scoped, tag = 'scratch operand']
  %s0 = inlined_call_operand.hbm [shape: bf16[2,8,512], index: 0, kind: input, shape index: {}]
  %s1 = inlined_call_operand.hbm [shape: bf16[512,512], index: 1, kind: input, shape index: {}]
  %s2 = inlined_call_operand.hbm [shape: f32[8,128], index: 2, kind: input, shape index: {}]
  %s3 = inlined_call_operand.vmem [shape: f32[8,128], index: 3, kind: input, shape index: {}]
  %s4 = inlined_call_operand.hbm [shape: bf16[2,8,512], index: 4, kind: output, shape index: {}]
  %s5 = sld [smem:[#allocation0]]
  $region69: #{tpu_custom_call.1} parent=0
    _
  %s7 = ssub.s32 1, %s5
  %s8 = scalar_select 0, %s7, %s5
  $region1: #{tpu_custom_call.1} parent=0
    #allocation3 [shape = 'u8[16384]{0}', space=vmem, size = 0x4000, scoped, tag = 'input window, operand 0']
    #allocation4 [shape = 's32[2]{0}', space=sflag, size = 0x8, scoped, tag = 'scoped memory for tpu_custom_call.1']
    #allocation5 [shape = 's32[2]{0}', space=sflag, size = 0x8, scoped, tag = 'scoped memory for tpu_custom_call.1']
    #allocation6 [shape = 'u8[524288]{0}', space=vmem, size = 0x80000, scoped, tag = 'input window, operand 1, single buffered']
    #allocation7 [shape = 's32[1]{0}', space=sflag, size = 0x4, scoped, tag = 'scoped memory for tpu_custom_call.1']
    #allocation8 [shape = 'u8[4096]{0}', space=vmem, size = 0x1000, scoped, tag = 'input window, operand 2, single buffered']
    #allocation9 [shape = 'u8[16384]{0}', space=vmem, size = 0x4000, scoped, tag = 'output window, operand 0']
    %9 = vsyncpa [#allocation4], 0
    %s10 = scalar_lea.sflag [#allocation4], 1
    %11 = vsyncpa %s10, 0
    %12 = vsyncpa [#allocation7], 0
    %13 = vsyncpa [#allocation5], 0
    %s14 = scalar_lea.sflag [#allocation5], 1
    %15 = vsyncpa %s14, 0
    loop: start=0, step=1, limit=4
    $region2: #{tpu_custom_call.1} parent=1 // loop_pre_header
      _
    $region3: #{tpu_custom_call.1} parent=1 // loop_header
      %s17 = sphi 0, %s21
      %p18 = scmp.ge.s32.totalorder %s17, 4
      %s24 = sphi 0, %s50
      %s25 = sphi 0, %s46
      %s26 = sphi 0, %s42
      %s27 = sphi 0, %s38
      %s28 = sphi 0, %s24
      %s29 = sphi 0, %s25
      %s30 = sphi 0, %s26
      %s31 = sphi 0, %s27
      %s32 = sphi 0, %s28
      %s33 = sphi 0, %s29
      %s34 = sphi 0, %s30
      %s35 = sphi 0, %s31
      %s57 = sphi 0, %s59
      %s60 = sphi 0, %s57
      %s61 = sphi 0, %s60
      %s77 = sphi 0, %s61
      %s85 = sphi 0, %s87
      %s88 = sphi 0, %s85
      %s89 = sphi 0, %s88
      %s105 = sphi 0, %s89
      %s111 = sphi 0, %s113
      %s114 = sphi 0, %s111
      %s115 = sphi 0, %s114
      %s131 = sphi 0, %s115
      %s137 = sphi 0, %s139
      %s140 = sphi 0, %s137
      %s141 = sphi 0, %s140
      %s157 = sphi 0, %s141
      %s167 = sphi 0, %s169
      %s170 = sphi 0, %s167
      %s171 = sphi 0, %s170
      %s187 = sphi 0, %s171
    $region4: #{tpu_custom_call.1} parent=1 // loop_header_branch
      %20 = sbr.rel (%p18) target = $region8
    $region5: #{tpu_custom_call.1} parent=1 // loop_body
      %s22 = ssub.s32 %s17, 1
      %s23 = ssub.s32 %s17, 2
      %s36 = sadd.s32 1, %s27
      %p37 = scmp.ge.s32.totalorder %s36, 1
      %s38 = scalar_select %p37, 0, %s36
      %s39 = sadd.s32 1, %s26
      %s40 = scalar_select %p37, %s39, %s26
      %p41 = scmp.ge.s32.totalorder %s40, 1
      %s42 = scalar_select %p41, 0, %s40
      %s43 = sadd.s32 1, %s25
      %s44 = scalar_select %p41, %s43, %s25
      %p45 = scmp.ge.s32.totalorder %s44, 1
      %s46 = scalar_select %p45, 0, %s44
      %s47 = sadd.s32 1, %s24
      %s48 = scalar_select %p45, %s47, %s24
      %p49 = scmp.ge.s32.totalorder %s48, 2
      %s50 = scalar_select %p49, 0, %s48
      %s51 = ssub.s32 %s24, %s50
      %s52 = ssub.s32 %s25, %s46
      %s53 = sor.u32 %s51, %s52
      %s54 = ssub.s32 %s27, %s38
      %s55 = sor.u32 %s53, %s54
      %p56 = scmp.eq.s32.totalorder %s55, 0
      %s58 = sadd.s32 %s57, 1
      %s59 = scalar_select %p56, %s57, %s58
      %p62 = pneg %p56
      %p63 = scmp.eq.s32.totalorder %s17, 1
      %p64 = por %p62, %p63
      %p65 = scmp.ne.s32.totalorder %s57, %s60
      %p66 = scmp.eq.s32.totalorder %s17, 0
      %p67 = por %p65, %p66
      %p68 = scmp.ne.s32.totalorder %s57, %s60
      %p69 = scmp.eq.s32.totalorder %s22, 1
      %p70 = por %p68, %p69
      %p71 = scmp.ne.s32.totalorder %s60, %s61
      %p72 = scmp.eq.s32.totalorder %s22, 0
      %p73 = por %p71, %p72
      %p74 = scmp.ne.s32.totalorder %s60, %s61
      %p75 = scmp.eq.s32.totalorder %s23, 1
      %p76 = por %p74, %p75
      %p78 = scmp.ne.s32.totalorder %s61, %s77
      %p79 = scmp.eq.s32.totalorder %s23, 0
      %p80 = por %p78, %p79
      %s81 = ssub.s32 %s26, %s42
      %s82 = ssub.s32 %s27, %s38
      %s83 = sor.u32 %s81, %s82
      %p84 = scmp.eq.s32.totalorder %s83, 0
      %s86 = sadd.s32 %s85, 1
      %s87 = scalar_select %p84, %s85, %s86
      %p90 = pneg %p84
      %p91 = scmp.eq.s32.totalorder %s17, 1
      %p92 = por %p90, %p91
      %p93 = scmp.ne.s32.totalorder %s85, %s88
      %p94 = scmp.eq.s32.totalorder %s17, 0
      %p95 = por %p93, %p94
      %p96 = scmp.ne.s32.totalorder %s85, %s88
      %p97 = scmp.eq.s32.totalorder %s22, 1
      %p98 = por %p96, %p97
      %p99 = scmp.ne.s32.totalorder %s88, %s89
      %p100 = scmp.eq.s32.totalorder %s22, 0
      %p101 = por %p99, %p100
      %p102 = scmp.ne.s32.totalorder %s88, %s89
      %p103 = scmp.eq.s32.totalorder %s23, 1
      %p104 = por %p102, %p103
      %p106 = scmp.ne.s32.totalorder %s89, %s105
      %p107 = scmp.eq.s32.totalorder %s23, 0
      %p108 = por %p106, %p107
      %s109 = ssub.s32 %s25, %s46
      %p110 = scmp.eq.s32.totalorder %s109, 0
      %s112 = sadd.s32 %s111, 1
      %s113 = scalar_select %p110, %s111, %s112
      %p116 = pneg %p110
      %p117 = scmp.eq.s32.totalorder %s17, 1
      %p118 = por %p116, %p117
      %p119 = scmp.ne.s32.totalorder %s111, %s114
      %p120 = scmp.eq.s32.totalorder %s17, 0
      %p121 = por %p119, %p120
      %p122 = scmp.ne.s32.totalorder %s111, %s114
      %p123 = scmp.eq.s32.totalorder %s22, 1
      %p124 = por %p122, %p123
      %p125 = scmp.ne.s32.totalorder %s114, %s115
      %p126 = scmp.eq.s32.totalorder %s22, 0
      %p127 = por %p125, %p126
      %p128 = scmp.ne.s32.totalorder %s114, %s115
      %p129 = scmp.eq.s32.totalorder %s23, 1
      %p130 = por %p128, %p129
      %p132 = scmp.ne.s32.totalorder %s115, %s131
      %p133 = scmp.eq.s32.totalorder %s23, 0
      %p134 = por %p132, %p133
      %s135 = ssub.s32 %s25, %s46
      %p136 = scmp.eq.s32.totalorder %s135, 0
      %s138 = sadd.s32 %s137, 1
      %s139 = scalar_select %p136, %s137, %s138
      %p142 = pneg %p136
      %p143 = scmp.eq.s32.totalorder %s17, 1
      %p144 = por %p142, %p143
      %p145 = scmp.ne.s32.totalorder %s137, %s140
      %p146 = scmp.eq.s32.totalorder %s17, 0
      %p147 = por %p145, %p146
      %p148 = scmp.ne.s32.totalorder %s137, %s140
      %p149 = scmp.eq.s32.totalorder %s22, 1
      %p150 = por %p148, %p149
      %p151 = scmp.ne.s32.totalorder %s140, %s141
      %p152 = scmp.eq.s32.totalorder %s22, 0
      %p153 = por %p151, %p152
      %p154 = scmp.ne.s32.totalorder %s140, %s141
      %p155 = scmp.eq.s32.totalorder %s23, 1
      %p156 = por %p154, %p155
      %p158 = scmp.ne.s32.totalorder %s141, %s157
      %p159 = scmp.eq.s32.totalorder %s23, 0
      %p160 = por %p158, %p159
      %s161 = ssub.s32 %s24, %s50
      %s162 = ssub.s32 %s25, %s46
      %s163 = sor.u32 %s161, %s162
      %s164 = ssub.s32 %s26, %s42
      %s165 = sor.u32 %s163, %s164
      %p166 = scmp.eq.s32.totalorder %s165, 0
      %s168 = sadd.s32 %s167, 1
      %s169 = scalar_select %p166, %s167, %s168
      %p172 = pneg %p166
      %p173 = scmp.eq.s32.totalorder %s17, 1
      %p174 = por %p172, %p173
      %p175 = scmp.ne.s32.totalorder %s167, %s170
      %p176 = scmp.eq.s32.totalorder %s17, 0
      %p177 = por %p175, %p176
      %p178 = scmp.ne.s32.totalorder %s167, %s170
      %p179 = scmp.eq.s32.totalorder %s22, 1
      %p180 = por %p178, %p179
      %p181 = scmp.ne.s32.totalorder %s170, %s171
      %p182 = scmp.eq.s32.totalorder %s22, 0
      %p183 = por %p181, %p182
      %p184 = scmp.ne.s32.totalorder %s170, %s171
      %p185 = scmp.eq.s32.totalorder %s23, 1
      %p186 = por %p184, %p185
      %p188 = scmp.ne.s32.totalorder %s171, %s187
      %p189 = scmp.eq.s32.totalorder %s23, 0
      %p190 = por %p188, %p189
      %p191 = scmp.le.s32.totalorder 1, %s17
      %p192 = scmp.lt.s32.totalorder %s17, 3
      %p193 = pnand %p191, %p192
      %p194 = pneg %p193
      // Predicated region
      $region9: #{tpu_custom_call.1} parent=5 // pred_check
        _
      $region10: #{tpu_custom_call.1} parent=5 // pred_check_branch
        %196 = sbr.rel (%p193) target = $region12
      $region11: #{tpu_custom_call.1} parent=5 // pred_region
        %s197 = ssub.s32 %s17, 1
        // Predicated region
        $region13: #{tpu_custom_call.1} parent=11 // pred_check
          %p198 = pneg %p101
        $region14: #{tpu_custom_call.1} parent=11 // pred_check_branch
          %200 = sbr.rel (%p198) target = $region16
        $region15: #{tpu_custom_call.1} parent=11 // pred_region
          %s201 = smul.u32 64, %s30
          %s202 = smul.u32 4, %s31
          %s204 = ssub.s32 16384, 16384
          %205 = vsyncadd [#allocation7], %s204
          %s206 = smul.addr %s201, 4
          %s207 = sadd.s32 %s202, %s206
          %s208 = smul.addr %s207, 64
          %s209 = scalar_lea.hbm %s1, %s208
          %s210 = sshll.u32 [#allocation6], 4
          %s211 = int_to_ptr.vmem [resolvable:$true] %s210
          %216 = dma.hbm_to_vmem [thread:$0]  %s209, 16384, %s211, [#allocation7], 256, 256, 16
        $region16: #{tpu_custom_call.1} parent=11 // pred_fallthru
          _
        // Predicated region
        $region17: #{tpu_custom_call.1} parent=11 // pred_check
          %p217 = pneg %p127
        $region18: #{tpu_custom_call.1} parent=11 // pred_check_branch
          %219 = sbr.rel (%p217) target = $region20
        $region19: #{tpu_custom_call.1} parent=11 // pred_region
          %s221 = ssub.s32 128, 128
          %222 = vsyncadd [#allocation7], %s221
          %s223 = smul.addr %s29, 128
          %s224 = scalar_lea.hbm %s2, %s223
          %s226 = sshll.u32 [#allocation8], 4
          %s227 = int_to_ptr.vmem [resolvable:$true] %s226
          %229 = dma.hbm_to_vmem [thread:$0]  %s224, 128, %s227, [#allocation7]
        $region20: #{tpu_custom_call.1} parent=11 // pred_fallthru
          _
        // Predicated region
        $region21: #{tpu_custom_call.1} parent=11 // pred_check
          %p230 = pneg %p153
        $region22: #{tpu_custom_call.1} parent=11 // pred_check_branch
          %232 = sbr.rel (%p230) target = $region24
        $region23: #{tpu_custom_call.1} parent=11 // pred_region
          %p233 = scmp.lt.s32.totalorder %s29, 0
          %s234 = scalar_select %p233, %s29, 0
          %s235 = smul.addr %s234, 8
          %s236 = scalar_lea.vmem %s3, %s235
        $region24: #{tpu_custom_call.1} parent=11 // pred_fallthru
          _
      $region12: #{tpu_custom_call.1} parent=5 // pred_fallthru
        _
      %p237 = scmp.lt.s32.totalorder %s17, 2
      // Predicated region
      $region25: #{tpu_custom_call.1} parent=5 // pred_check
        %p238 = pneg %p237
      $region26: #{tpu_custom_call.1} parent=5 // pred_check_branch
        %240 = sbr.rel (%p238) target = $region28
      $region27: #{tpu_custom_call.1} parent=5 // pred_region
        // Predicated region
        $region29: #{tpu_custom_call.1} parent=27 // pred_check
          %p241 = pneg %p67
        $region30: #{tpu_custom_call.1} parent=27 // pred_check_branch
          %243 = sbr.rel (%p241) target = $region32
        $region31: #{tpu_custom_call.1} parent=27 // pred_region
          %s244 = sand.u32 %s57, 1
          %s245 = scalar_lea.sflag [#allocation4], %s244
          %s246 = sand.u32 %s57, 1
          %s247 = smul.addr %s246, 16
          %s248 = scalar_lea.vmem [#allocation3], %s247
          %s249 = smul.u32 4, %s27
          %s251 = ssub.s32 256, 256
          %252 = vsyncadd %s245, %s251
          %s253 = smul.addr %s25, 4
          %s254 = sadd.s32 %s249, %s253
          %s255 = smul.addr %s24, 4
          %s256 = sadd.s32 %s254, %s255
          %s257 = smul.addr %s256, 64
          %s258 = scalar_lea.hbm %s0, %s257
          %s260 = sshll.u32 %s248, 4
          %s261 = int_to_ptr.vmem [resolvable:$true] %s260
          %263 = dma.hbm_to_vmem [thread:$0]  %s258, 256, %s261, %s245
        $region32: #{tpu_custom_call.1} parent=27 // pred_fallthru
          _
      $region28: #{tpu_custom_call.1} parent=5 // pred_fallthru
        _
      %p264 = scmp.le.s32.totalorder 1, %s17
      %p265 = scmp.lt.s32.totalorder %s17, 3
      %p266 = pnand %p264, %p265
      %p267 = pneg %p266
      // Predicated region
      $region33: #{tpu_custom_call.1} parent=5 // pred_check
        _
      $region34: #{tpu_custom_call.1} parent=5 // pred_check_branch
        %269 = sbr.rel (%p266) target = $region36
      $region35: #{tpu_custom_call.1} parent=5 // pred_region
        %s270 = ssub.s32 %s17, 1
        %s271 = sand.u32 %s60, 1
        %s272 = scalar_lea.sflag [#allocation4], %s271
        %s273 = sand.u32 %s60, 1
        %s274 = smul.addr %s273, 16
        %s275 = scalar_lea.vmem [#allocation3], %s274
        // Predicated region
        $region37: #{tpu_custom_call.1} parent=35 // pred_check
          %p276 = pneg %p73
        $region38: #{tpu_custom_call.1} parent=35 // pred_check_branch
          %278 = sbr.rel (%p276) target = $region40
        $region39: #{tpu_custom_call.1} parent=35 // pred_region
          %279 = dma.done %s272, 256
        $region40: #{tpu_custom_call.1} parent=35 // pred_fallthru
          _
        // Predicated region
        $region41: #{tpu_custom_call.1} parent=35 // pred_check
          %p280 = pneg %p101
        $region42: #{tpu_custom_call.1} parent=35 // pred_check_branch
          %282 = sbr.rel (%p280) target = $region44
        $region43: #{tpu_custom_call.1} parent=35 // pred_region
          %283 = dma.done [#allocation7], 16384
        $region44: #{tpu_custom_call.1} parent=35 // pred_fallthru
          _
        // Predicated region
        $region45: #{tpu_custom_call.1} parent=35 // pred_check
          %p284 = pneg %p127
        $region46: #{tpu_custom_call.1} parent=35 // pred_check_branch
          %286 = sbr.rel (%p284) target = $region48
        $region47: #{tpu_custom_call.1} parent=35 // pred_region
          %287 = dma.done [#allocation7], 128
        $region48: #{tpu_custom_call.1} parent=35 // pred_fallthru
          _
        %s288 = sand.u32 %s60, 1
        %s289 = scalar_lea.sflag [#allocation4], %s288
        %s290 = sand.u32 %s60, 1
        %s291 = smul.addr %s290, 16
        %s292 = scalar_lea.vmem [#allocation3], %s291
        %p293 = pneg %p73
        %p294 = pneg %p70
        %p295 = pneg %p101
        %p296 = pneg %p98
        %p297 = pneg %p127
        %p298 = pneg %p124
        %p299 = scmp.lt.s32.totalorder %s29, 0
        %s300 = scalar_select %p299, %s29, 0
        %s301 = smul.addr %s300, 8
        %s302 = scalar_lea.vmem %s3, %s301
        %p303 = pneg %p153
        %p304 = pneg %p150
        %p305 = pneg %p183
        %p306 = pneg %p180
        %s307 = sand.u32 %s170, 1
        %s308 = scalar_lea.sflag [#allocation5], %s307
        %s309 = sand.u32 %s170, 1
        %s310 = smul.addr %s309, 16
        %s311 = scalar_lea.vmem [#allocation9], %s310
        %s312 = smul.u32 4, %s31
        %s313 = smul.u32 64, %s30
        %s314 = smul.u32 4, %s31
        %p315 = scmp.lt.s32.totalorder %s29, 0
        %s316 = scalar_select %p315, %s29, 0
        %s317 = smul.addr %s316, 8
        %s318 = scalar_lea.vmem %s3, %s317
        %s319 = smul.u32 4, %s30
        %p320 = scmp.eq.s32.totalorder %s31, 0
        // Predicated region
        $region49: #{tpu_custom_call.1} parent=35 // pred_check
          %p321 = pneg %p320
        $region50: #{tpu_custom_call.1} parent=35 // pred_check_branch
          %323 = sbr.rel (%p321) target = $region52
        $region51: #{tpu_custom_call.1} parent=35 // pred_region
          %324 = vst [vmem:[#allocation2] sm:$0xff] 0.0
          %325 = vst [vmem:[#allocation2 + $0x8] sm:$0xff] 0.0
          %326 = vst [vmem:[#allocation2 + $0x10] sm:$0xff] 0.0
          %327 = vst [vmem:[#allocation2 + $0x18] sm:$0xff] 0.0
        $region52: #{tpu_custom_call.1} parent=35 // pred_fallthru
          _
        %v328 = vld [vmem:[#allocation2] sm:$0xff]
        %v329 = vld [vmem:[#allocation2 + $0x8] sm:$0xff]
        %v330 = vld [vmem:[#allocation2 + $0x10] sm:$0xff]
        %v331 = vld [vmem:[#allocation2 + $0x18] sm:$0xff]
        %v332 = vld [vmem:[%s275] sm:$0xff]
        %v333 = vld [vmem:[%s275 + $0x8] sm:$0xff]
        %v334 = vld [vmem:[#allocation6] sm:$0xff]
        %v335 = vld [vmem:[#allocation6 + $0x8] sm:$0xff]
        %v336 = vld [vmem:[#allocation6 + $0x10] sm:$0xff]
        %v337 = vld [vmem:[#allocation6 + $0x18] sm:$0xff]
        %v338 = vld [vmem:[#allocation6 + $0x20] sm:$0xff]
        %v339 = vld [vmem:[#allocation6 + $0x28] sm:$0xff]
        %v340 = vld [vmem:[#allocation6 + $0x30] sm:$0xff]
        %v341 = vld [vmem:[#allocation6 + $0x38] sm:$0xff]
        %v342 = vld [vmem:[#allocation6 + $0x40] sm:$0xff]
        %v343 = vld [vmem:[#allocation6 + $0x48] sm:$0xff]
        %v344 = vld [vmem:[#allocation6 + $0x50] sm:$0xff]
        %v345 = vld [vmem:[#allocation6 + $0x58] sm:$0xff]
        %v346 = vld [vmem:[#allocation6 + $0x60] sm:$0xff]
        %v347 = vld [vmem:[#allocation6 + $0x68] sm:$0xff]
        %v348 = vld [vmem:[#allocation6 + $0x70] sm:$0xff]
        %v349 = vld [vmem:[#allocation6 + $0x78] sm:$0xff]
        %v350 = vld [vmem:[#allocation6 + $0x80] sm:$0xff]
        %v351 = vld [vmem:[#allocation6 + $0x88] sm:$0xff]
        %v352 = vld [vmem:[#allocation6 + $0x90] sm:$0xff]
        %v353 = vld [vmem:[#allocation6 + $0x98] sm:$0xff]
        %v354 = vld [vmem:[#allocation6 + $0xa0] sm:$0xff]
        %v355 = vld [vmem:[#allocation6 + $0xa8] sm:$0xff]
        %v356 = vld [vmem:[#allocation6 + $0xb0] sm:$0xff]
        %v357 = vld [vmem:[#allocation6 + $0xb8] sm:$0xff]
        %v358 = vld [vmem:[#allocation6 + $0xc0] sm:$0xff]
        %v359 = vld [vmem:[#allocation6 + $0xc8] sm:$0xff]
        %v360 = vld [vmem:[#allocation6 + $0xd0] sm:$0xff]
        %v361 = vld [vmem:[#allocation6 + $0xd8] sm:$0xff]
        %v362 = vld [vmem:[#allocation6 + $0xe0] sm:$0xff]
        %v363 = vld [vmem:[#allocation6 + $0xe8] sm:$0xff]
        %v364 = vld [vmem:[#allocation6 + $0xf0] sm:$0xff]
        %v365 = vld [vmem:[#allocation6 + $0xf8] sm:$0xff]
        %v366 = vld [vmem:[#allocation6 + $0x100] sm:$0xff]
        %v367 = vld [vmem:[#allocation6 + $0x108] sm:$0xff]
        %v368 = vld [vmem:[#allocation6 + $0x110] sm:$0xff]
        %v369 = vld [vmem:[#allocation6 + $0x118] sm:$0xff]
        %v370 = vld [vmem:[#allocation6 + $0x120] sm:$0xff]
        %v371 = vld [vmem:[#allocation6 + $0x128] sm:$0xff]
        %v372 = vld [vmem:[#allocation6 + $0x130] sm:$0xff]
        %v373 = vld [vmem:[#allocation6 + $0x138] sm:$0xff]
        %v374 = vld [vmem:[#allocation6 + $0x140] sm:$0xff]
        %v375 = vld [vmem:[#allocation6 + $0x148] sm:$0xff]
        %v376 = vld [vmem:[#allocation6 + $0x150] sm:$0xff]
        %v377 = vld [vmem:[#allocation6 + $0x158] sm:$0xff]
        %v378 = vld [vmem:[#allocation6 + $0x160] sm:$0xff]
        %v379 = vld [vmem:[#allocation6 + $0x168] sm:$0xff]
        %v380 = vld [vmem:[#allocation6 + $0x170] sm:$0xff]
        %v381 = vld [vmem:[#allocation6 + $0x178] sm:$0xff]
        %v382 = vld [vmem:[#allocation6 + $0x180] sm:$0xff]
        %v383 = vld [vmem:[#allocation6 + $0x188] sm:$0xff]
        %v384 = vld [vmem:[#allocation6 + $0x190] sm:$0xff]
        %v385 = vld [vmem:[#allocation6 + $0x198] sm:$0xff]
        %v386 = vld [vmem:[#allocation6 + $0x1a0] sm:$0xff]
        %v387 = vld [vmem:[#allocation6 + $0x1a8] sm:$0xff]
        %v388 = vld [vmem:[#allocation6 + $0x1b0] sm:$0xff]
        %v389 = vld [vmem:[#allocation6 + $0x1b8] sm:$0xff]
        %v390 = vld [vmem:[#allocation6 + $0x1c0] sm:$0xff]
        %v391 = vld [vmem:[#allocation6 + $0x1c8] sm:$0xff]
        %v392 = vld [vmem:[#allocation6 + $0x1d0] sm:$0xff]
        %v393 = vld [vmem:[#allocation6 + $0x1d8] sm:$0xff]
        %v394 = vld [vmem:[#allocation6 + $0x1e0] sm:$0xff]
        %v395 = vld [vmem:[#allocation6 + $0x1e8] sm:$0xff]
        %v396 = vld [vmem:[#allocation6 + $0x1f0] sm:$0xff]
        %v397 = vld [vmem:[#allocation6 + $0x1f8] sm:$0xff]
        %v398 = vld [vmem:[#allocation6 + $0x200] sm:$0xff]
        %v399 = vld [vmem:[#allocation6 + $0x208] sm:$0xff]
        %v400 = vld [vmem:[#allocation6 + $0x210] sm:$0xff]
        %v401 = vld [vmem:[#allocation6 + $0x218] sm:$0xff]
        %v402 = vld [vmem:[#allocation6 + $0x220] sm:$0xff]
        %v403 = vld [vmem:[#allocation6 + $0x228] sm:$0xff]
        %v404 = vld [vmem:[#allocation6 + $0x230] sm:$0xff]
        %v405 = vld [vmem:[#allocation6 + $0x238] sm:$0xff]
        %v406 = vld [vmem:[#allocation6 + $0x240] sm:$0xff]
        %v407 = vld [vmem:[#allocation6 + $0x248] sm:$0xff]
        %v408 = vld [vmem:[#allocation6 + $0x250] sm:$0xff]
        %v409 = vld [vmem:[#allocation6 + $0x258] sm:$0xff]
        %v410 = vld [vmem:[#allocation6 + $0x260] sm:$0xff]
        %v411 = vld [vmem:[#allocation6 + $0x268] sm:$0xff]
        %v412 = vld [vmem:[#allocation6 + $0x270] sm:$0xff]
        %v413 = vld [vmem:[#allocation6 + $0x278] sm:$0xff]
        %v414 = vld [vmem:[#allocation6 + $0x280] sm:$0xff]
        %v415 = vld [vmem:[#allocation6 + $0x288] sm:$0xff]
        %v416 = vld [vmem:[#allocation6 + $0x290] sm:$0xff]
        %v417 = vld [vmem:[#allocation6 + $0x298] sm:$0xff]
        %v418 = vld [vmem:[#allocation6 + $0x2a0] sm:$0xff]
        %v419 = vld [vmem:[#allocation6 + $0x2a8] sm:$0xff]
        %v420 = vld [vmem:[#allocation6 + $0x2b0] sm:$0xff]
        %v421 = vld [vmem:[#allocation6 + $0x2b8] sm:$0xff]
        %v422 = vld [vmem:[#allocation6 + $0x2c0] sm:$0xff]
        %v423 = vld [vmem:[#allocation6 + $0x2c8] sm:$0xff]
        %v424 = vld [vmem:[#allocation6 + $0x2d0] sm:$0xff]
        %v425 = vld [vmem:[#allocation6 + $0x2d8] sm:$0xff]
        %v426 = vld [vmem:[#allocation6 + $0x2e0] sm:$0xff]
        %v427 = vld [vmem:[#allocation6 + $0x2e8] sm:$0xff]
        %v428 = vld [vmem:[#allocation6 + $0x2f0] sm:$0xff]
        %v429 = vld [vmem:[#allocation6 + $0x2f8] sm:$0xff]
        %v430 = vld [vmem:[#allocation6 + $0x300] sm:$0xff]
        %v431 = vld [vmem:[#allocation6 + $0x308] sm:$0xff]
        %v432 = vld [vmem:[#allocation6 + $0x310] sm:$0xff]
        %v433 = vld [vmem:[#allocation6 + $0x318] sm:$0xff]
        %v434 = vld [vmem:[#allocation6 + $0x320] sm:$0xff]
        %v435 = vld [vmem:[#allocation6 + $0x328] sm:$0xff]
        %v436 = vld [vmem:[#allocation6 + $0x330] sm:$0xff]
        %v437 = vld [vmem:[#allocation6 + $0x338] sm:$0xff]
        %v438 = vld [vmem:[#allocation6 + $0x340] sm:$0xff]
        %v439 = vld [vmem:[#allocation6 + $0x348] sm:$0xff]
        %v440 = vld [vmem:[#allocation6 + $0x350] sm:$0xff]
        %v441 = vld [vmem:[#allocation6 + $0x358] sm:$0xff]
        %v442 = vld [vmem:[#allocation6 + $0x360] sm:$0xff]
        %v443 = vld [vmem:[#allocation6 + $0x368] sm:$0xff]
        %v444 = vld [vmem:[#allocation6 + $0x370] sm:$0xff]
        %v445 = vld [vmem:[#allocation6 + $0x378] sm:$0xff]
        %v446 = vld [vmem:[#allocation6 + $0x380] sm:$0xff]
        %v447 = vld [vmem:[#allocation6 + $0x388] sm:$0xff]
        %v448 = vld [vmem:[#allocation6 + $0x390] sm:$0xff]
        %v449 = vld [vmem:[#allocation6 + $0x398] sm:$0xff]
        %v450 = vld [vmem:[#allocation6 + $0x3a0] sm:$0xff]
        %v451 = vld [vmem:[#allocation6 + $0x3a8] sm:$0xff]
        %v452 = vld [vmem:[#allocation6 + $0x3b0] sm:$0xff]
        %v453 = vld [vmem:[#allocation6 + $0x3b8] sm:$0xff]
        %v454 = vld [vmem:[#allocation6 + $0x3c0] sm:$0xff]
        %v455 = vld [vmem:[#allocation6 + $0x3c8] sm:$0xff]
        %v456 = vld [vmem:[#allocation6 + $0x3d0] sm:$0xff]
        %v457 = vld [vmem:[#allocation6 + $0x3d8] sm:$0xff]
        %v458 = vld [vmem:[#allocation6 + $0x3e0] sm:$0xff]
        %v459 = vld [vmem:[#allocation6 + $0x3e8] sm:$0xff]
        %v460 = vld [vmem:[#allocation6 + $0x3f0] sm:$0xff]
        %v461 = vld [vmem:[#allocation6 + $0x3f8] sm:$0xff]
        %v464 = vunpack.c.l.b16 %v332
        %v465 = vunpack.c.h.b16 %v332
        %v466 = vunpack.c.l.b16 %v333
        %v467 = vunpack.c.h.b16 %v333
        %v468 = vpack.c.b16 %v464, %v464
        %v469 = vpack.c.b16 %v465, %v465
        %v470 = vpack.c.b16 %v466, %v466
        %v471 = vpack.c.b16 %v467, %v467
        %v604 = vunpack.c.l.b16 %v334
        %v605 = vunpack.c.h.b16 %v334
        %v606 = vunpack.c.l.b16 %v335
        %v607 = vunpack.c.h.b16 %v335
        %v608 = vunpack.c.l.b16 %v336
        %v609 = vunpack.c.h.b16 %v336
        %v610 = vunpack.c.l.b16 %v337
        %v611 = vunpack.c.h.b16 %v337
        %v612 = vunpack.c.l.b16 %v338
        %v613 = vunpack.c.h.b16 %v338
        %v614 = vunpack.c.l.b16 %v339
        %v615 = vunpack.c.h.b16 %v339
        %v616 = vunpack.c.l.b16 %v340
        %v617 = vunpack.c.h.b16 %v340
        %v618 = vunpack.c.l.b16 %v341
        %v619 = vunpack.c.h.b16 %v341
        %v620 = vunpack.c.l.b16 %v342
        %v621 = vunpack.c.h.b16 %v342
        %v622 = vunpack.c.l.b16 %v343
        %v623 = vunpack.c.h.b16 %v343
        %v624 = vunpack.c.l.b16 %v344
        %v625 = vunpack.c.h.b16 %v344
        %v626 = vunpack.c.l.b16 %v345
        %v627 = vunpack.c.h.b16 %v345
        %v628 = vunpack.c.l.b16 %v346
        %v629 = vunpack.c.h.b16 %v346
        %v630 = vunpack.c.l.b16 %v347
        %v631 = vunpack.c.h.b16 %v347
        %v632 = vunpack.c.l.b16 %v348
        %v633 = vunpack.c.h.b16 %v348
        %v634 = vunpack.c.l.b16 %v349
        %v635 = vunpack.c.h.b16 %v349
        %v636 = vunpack.c.l.b16 %v350
        %v637 = vunpack.c.h.b16 %v350
        %v638 = vunpack.c.l.b16 %v351
        %v639 = vunpack.c.h.b16 %v351
        %v640 = vunpack.c.l.b16 %v352
        %v641 = vunpack.c.h.b16 %v352
        %v642 = vunpack.c.l.b16 %v353
        %v643 = vunpack.c.h.b16 %v353
        %v644 = vunpack.c.l.b16 %v354
        %v645 = vunpack.c.h.b16 %v354
        %v646 = vunpack.c.l.b16 %v355
        %v647 = vunpack.c.h.b16 %v355
        %v648 = vunpack.c.l.b16 %v356
        %v649 = vunpack.c.h.b16 %v356
        %v650 = vunpack.c.l.b16 %v357
        %v651 = vunpack.c.h.b16 %v357
        %v652 = vunpack.c.l.b16 %v358
        %v653 = vunpack.c.h.b16 %v358
        %v654 = vunpack.c.l.b16 %v359
        %v655 = vunpack.c.h.b16 %v359
        %v656 = vunpack.c.l.b16 %v360
        %v657 = vunpack.c.h.b16 %v360
        %v658 = vunpack.c.l.b16 %v361
        %v659 = vunpack.c.h.b16 %v361
        %v660 = vunpack.c.l.b16 %v362
        %v661 = vunpack.c.h.b16 %v362
        %v662 = vunpack.c.l.b16 %v363
        %v663 = vunpack.c.h.b16 %v363
        %v664 = vunpack.c.l.b16 %v364
        %v665 = vunpack.c.h.b16 %v364
        %v666 = vunpack.c.l.b16 %v365
        %v667 = vunpack.c.h.b16 %v365
        %v668 = vunpack.c.l.b16 %v366
        %v669 = vunpack.c.h.b16 %v366
        %v670 = vunpack.c.l.b16 %v367
        %v671 = vunpack.c.h.b16 %v367
        %v672 = vunpack.c.l.b16 %v368
        %v673 = vunpack.c.h.b16 %v368
        %v674 = vunpack.c.l.b16 %v369
        %v675 = vunpack.c.h.b16 %v369
        %v676 = vunpack.c.l.b16 %v370
        %v677 = vunpack.c.h.b16 %v370
        %v678 = vunpack.c.l.b16 %v371
        %v679 = vunpack.c.h.b16 %v371
        %v680 = vunpack.c.l.b16 %v372
        %v681 = vunpack.c.h.b16 %v372
        %v682 = vunpack.c.l.b16 %v373
        %v683 = vunpack.c.h.b16 %v373
        %v684 = vunpack.c.l.b16 %v374
        %v685 = vunpack.c.h.b16 %v374
        %v686 = vunpack.c.l.b16 %v375
        %v687 = vunpack.c.h.b16 %v375
        %v688 = vunpack.c.l.b16 %v376
        %v689 = vunpack.c.h.b16 %v376
        %v690 = vunpack.c.l.b16 %v377
        %v691 = vunpack.c.h.b16 %v377
        %v692 = vunpack.c.l.b16 %v378
        %v693 = vunpack.c.h.b16 %v378
        %v694 = vunpack.c.l.b16 %v379
        %v695 = vunpack.c.h.b16 %v379
        %v696 = vunpack.c.l.b16 %v380
        %v697 = vunpack.c.h.b16 %v380
        %v698 = vunpack.c.l.b16 %v381
        %v699 = vunpack.c.h.b16 %v381
        %v700 = vunpack.c.l.b16 %v382
        %v701 = vunpack.c.h.b16 %v382
        %v702 = vunpack.c.l.b16 %v383
        %v703 = vunpack.c.h.b16 %v383
        %v704 = vunpack.c.l.b16 %v384
        %v705 = vunpack.c.h.b16 %v384
        %v706 = vunpack.c.l.b16 %v385
        %v707 = vunpack.c.h.b16 %v385
        %v708 = vunpack.c.l.b16 %v386
        %v709 = vunpack.c.h.b16 %v386
        %v710 = vunpack.c.l.b16 %v387
        %v711 = vunpack.c.h.b16 %v387
        %v712 = vunpack.c.l.b16 %v388
        %v713 = vunpack.c.h.b16 %v388
        %v714 = vunpack.c.l.b16 %v389
        %v715 = vunpack.c.h.b16 %v389
        %v716 = vunpack.c.l.b16 %v390
        %v717 = vunpack.c.h.b16 %v390
        %v718 = vunpack.c.l.b16 %v391
        %v719 = vunpack.c.h.b16 %v391
        %v720 = vunpack.c.l.b16 %v392
        %v721 = vunpack.c.h.b16 %v392
        %v722 = vunpack.c.l.b16 %v393
        %v723 = vunpack.c.h.b16 %v393
        %v724 = vunpack.c.l.b16 %v394
        %v725 = vunpack.c.h.b16 %v394
        %v726 = vunpack.c.l.b16 %v395
        %v727 = vunpack.c.h.b16 %v395
        %v728 = vunpack.c.l.b16 %v396
        %v729 = vunpack.c.h.b16 %v396
        %v730 = vunpack.c.l.b16 %v397
        %v731 = vunpack.c.h.b16 %v397
        %v732 = vunpack.c.l.b16 %v398
        %v733 = vunpack.c.h.b16 %v398
        %v734 = vunpack.c.l.b16 %v399
        %v735 = vunpack.c.h.b16 %v399
        %v736 = vunpack.c.l.b16 %v400
        %v737 = vunpack.c.h.b16 %v400
        %v738 = vunpack.c.l.b16 %v401
        %v739 = vunpack.c.h.b16 %v401
        %v740 = vunpack.c.l.b16 %v402
        %v741 = vunpack.c.h.b16 %v402
        %v742 = vunpack.c.l.b16 %v403
        %v743 = vunpack.c.h.b16 %v403
        %v744 = vunpack.c.l.b16 %v404
        %v745 = vunpack.c.h.b16 %v404
        %v746 = vunpack.c.l.b16 %v405
        %v747 = vunpack.c.h.b16 %v405
        %v748 = vunpack.c.l.b16 %v406
        %v749 = vunpack.c.h.b16 %v406
        %v750 = vunpack.c.l.b16 %v407
        %v751 = vunpack.c.h.b16 %v407
        %v752 = vunpack.c.l.b16 %v408
        %v753 = vunpack.c.h.b16 %v408
        %v754 = vunpack.c.l.b16 %v409
        %v755 = vunpack.c.h.b16 %v409
        %v756 = vunpack.c.l.b16 %v410
        %v757 = vunpack.c.h.b16 %v410
        %v758 = vunpack.c.l.b16 %v411
        %v759 = vunpack.c.h.b16 %v411
        %v760 = vunpack.c.l.b16 %v412
        %v761 = vunpack.c.h.b16 %v412
        %v762 = vunpack.c.l.b16 %v413
        %v763 = vunpack.c.h.b16 %v413
        %v764 = vunpack.c.l.b16 %v414
        %v765 = vunpack.c.h.b16 %v414
        %v766 = vunpack.c.l.b16 %v415
        %v767 = vunpack.c.h.b16 %v415
        %v768 = vunpack.c.l.b16 %v416
        %v769 = vunpack.c.h.b16 %v416
        %v770 = vunpack.c.l.b16 %v417
        %v771 = vunpack.c.h.b16 %v417
        %v772 = vunpack.c.l.b16 %v418
        %v773 = vunpack.c.h.b16 %v418
        %v774 = vunpack.c.l.b16 %v419
        %v775 = vunpack.c.h.b16 %v419
        %v776 = vunpack.c.l.b16 %v420
        %v777 = vunpack.c.h.b16 %v420
        %v778 = vunpack.c.l.b16 %v421
        %v779 = vunpack.c.h.b16 %v421
        %v780 = vunpack.c.l.b16 %v422
        %v781 = vunpack.c.h.b16 %v422
        %v782 = vunpack.c.l.b16 %v423
        %v783 = vunpack.c.h.b16 %v423
        %v784 = vunpack.c.l.b16 %v424
        %v785 = vunpack.c.h.b16 %v424
        %v786 = vunpack.c.l.b16 %v425
        %v787 = vunpack.c.h.b16 %v425
        %v788 = vunpack.c.l.b16 %v426
        %v789 = vunpack.c.h.b16 %v426
        %v790 = vunpack.c.l.b16 %v427
        %v791 = vunpack.c.h.b16 %v427
        %v792 = vunpack.c.l.b16 %v428
        %v793 = vunpack.c.h.b16 %v428
        %v794 = vunpack.c.l.b16 %v429
        %v795 = vunpack.c.h.b16 %v429
        %v796 = vunpack.c.l.b16 %v430
        %v797 = vunpack.c.h.b16 %v430
        %v798 = vunpack.c.l.b16 %v431
        %v799 = vunpack.c.h.b16 %v431
        %v800 = vunpack.c.l.b16 %v432
        %v801 = vunpack.c.h.b16 %v432
        %v802 = vunpack.c.l.b16 %v433
        %v803 = vunpack.c.h.b16 %v433
        %v804 = vunpack.c.l.b16 %v434
        %v805 = vunpack.c.h.b16 %v434
        %v806 = vunpack.c.l.b16 %v435
        %v807 = vunpack.c.h.b16 %v435
        %v808 = vunpack.c.l.b16 %v436
        %v809 = vunpack.c.h.b16 %v436
        %v810 = vunpack.c.l.b16 %v437
        %v811 = vunpack.c.h.b16 %v437
        %v812 = vunpack.c.l.b16 %v438
        %v813 = vunpack.c.h.b16 %v438
        %v814 = vunpack.c.l.b16 %v439
        %v815 = vunpack.c.h.b16 %v439
        %v816 = vunpack.c.l.b16 %v440
        %v817 = vunpack.c.h.b16 %v440
        %v818 = vunpack.c.l.b16 %v441
        %v819 = vunpack.c.h.b16 %v441
        %v820 = vunpack.c.l.b16 %v442
        %v821 = vunpack.c.h.b16 %v442
        %v822 = vunpack.c.l.b16 %v443
        %v823 = vunpack.c.h.b16 %v443
        %v824 = vunpack.c.l.b16 %v444
        %v825 = vunpack.c.h.b16 %v444
        %v826 = vunpack.c.l.b16 %v445
        %v827 = vunpack.c.h.b16 %v445
        %v828 = vunpack.c.l.b16 %v446
        %v829 = vunpack.c.h.b16 %v446
        %v830 = vunpack.c.l.b16 %v447
        %v831 = vunpack.c.h.b16 %v447
        %v832 = vunpack.c.l.b16 %v448
        %v833 = vunpack.c.h.b16 %v448
        %v834 = vunpack.c.l.b16 %v449
        %v835 = vunpack.c.h.b16 %v449
        %v836 = vunpack.c.l.b16 %v450
        %v837 = vunpack.c.h.b16 %v450
        %v838 = vunpack.c.l.b16 %v451
        %v839 = vunpack.c.h.b16 %v451
        %v840 = vunpack.c.l.b16 %v452
        %v841 = vunpack.c.h.b16 %v452
        %v842 = vunpack.c.l.b16 %v453
        %v843 = vunpack.c.h.b16 %v453
        %v844 = vunpack.c.l.b16 %v454
        %v845 = vunpack.c.h.b16 %v454
        %v846 = vunpack.c.l.b16 %v455
        %v847 = vunpack.c.h.b16 %v455
        %v848 = vunpack.c.l.b16 %v456
        %v849 = vunpack.c.h.b16 %v456
        %v850 = vunpack.c.l.b16 %v457
        %v851 = vunpack.c.h.b16 %v457
        %v852 = vunpack.c.l.b16 %v458
        %v853 = vunpack.c.h.b16 %v458
        %v854 = vunpack.c.l.b16 %v459
        %v855 = vunpack.c.h.b16 %v459
        %v856 = vunpack.c.l.b16 %v460
        %v857 = vunpack.c.h.b16 %v460
        %v858 = vunpack.c.l.b16 %v461
        %v859 = vunpack.c.h.b16 %v461
        %v860 = vpack.c.b16 %v608, %v604
        %v861 = vpack.c.b16 %v609, %v605
        %v862 = vpack.c.b16 %v610, %v606
        %v863 = vpack.c.b16 %v611, %v607
        %v864 = vpack.c.b16 %v616, %v612
        %v865 = vpack.c.b16 %v617, %v613
        %v866 = vpack.c.b16 %v618, %v614
        %v867 = vpack.c.b16 %v619, %v615
        %v868 = vpack.c.b16 %v624, %v620
        %v869 = vpack.c.b16 %v625, %v621
        %v870 = vpack.c.b16 %v626, %v622
        %v871 = vpack.c.b16 %v627, %v623
        %v872 = vpack.c.b16 %v632, %v628
        %v873 = vpack.c.b16 %v633, %v629
        %v874 = vpack.c.b16 %v634, %v630
        %v875 = vpack.c.b16 %v635, %v631
        %v876 = vpack.c.b16 %v640, %v636
        %v877 = vpack.c.b16 %v641, %v637
        %v878 = vpack.c.b16 %v642, %v638
        %v879 = vpack.c.b16 %v643, %v639
        %v880 = vpack.c.b16 %v648, %v644
        %v881 = vpack.c.b16 %v649, %v645
        %v882 = vpack.c.b16 %v650, %v646
        %v883 = vpack.c.b16 %v651, %v647
        %v884 = vpack.c.b16 %v656, %v652
        %v885 = vpack.c.b16 %v657, %v653
        %v886 = vpack.c.b16 %v658, %v654
        %v887 = vpack.c.b16 %v659, %v655
        %v888 = vpack.c.b16 %v664, %v660
        %v889 = vpack.c.b16 %v665, %v661
        %v890 = vpack.c.b16 %v666, %v662
        %v891 = vpack.c.b16 %v667, %v663
        %v892 = vpack.c.b16 %v672, %v668
        %v893 = vpack.c.b16 %v673, %v669
        %v894 = vpack.c.b16 %v674, %v670
        %v895 = vpack.c.b16 %v675, %v671
        %v896 = vpack.c.b16 %v680, %v676
        %v897 = vpack.c.b16 %v681, %v677
        %v898 = vpack.c.b16 %v682, %v678
        %v899 = vpack.c.b16 %v683, %v679
        %v900 = vpack.c.b16 %v688, %v684
        %v901 = vpack.c.b16 %v689, %v685
        %v902 = vpack.c.b16 %v690, %v686
        %v903 = vpack.c.b16 %v691, %v687
        %v904 = vpack.c.b16 %v696, %v692
        %v905 = vpack.c.b16 %v697, %v693
        %v906 = vpack.c.b16 %v698, %v694
        %v907 = vpack.c.b16 %v699, %v695
        %v908 = vpack.c.b16 %v704, %v700
        %v909 = vpack.c.b16 %v705, %v701
        %v910 = vpack.c.b16 %v706, %v702
        %v911 = vpack.c.b16 %v707, %v703
        %v912 = vpack.c.b16 %v712, %v708
        %v913 = vpack.c.b16 %v713, %v709
        %v914 = vpack.c.b16 %v714, %v710
        %v915 = vpack.c.b16 %v715, %v711
        %v916 = vpack.c.b16 %v720, %v716
        %v917 = vpack.c.b16 %v721, %v717
        %v918 = vpack.c.b16 %v722, %v718
        %v919 = vpack.c.b16 %v723, %v719
        %v920 = vpack.c.b16 %v728, %v724
        %v921 = vpack.c.b16 %v729, %v725
        %v922 = vpack.c.b16 %v730, %v726
        %v923 = vpack.c.b16 %v731, %v727
        %v924 = vpack.c.b16 %v736, %v732
        %v925 = vpack.c.b16 %v737, %v733
        %v926 = vpack.c.b16 %v738, %v734
        %v927 = vpack.c.b16 %v739, %v735
        %v928 = vpack.c.b16 %v744, %v740
        %v929 = vpack.c.b16 %v745, %v741
        %v930 = vpack.c.b16 %v746, %v742
        %v931 = vpack.c.b16 %v747, %v743
        %v932 = vpack.c.b16 %v752, %v748
        %v933 = vpack.c.b16 %v753, %v749
        %v934 = vpack.c.b16 %v754, %v750
        %v935 = vpack.c.b16 %v755, %v751
        %v936 = vpack.c.b16 %v760, %v756
        %v937 = vpack.c.b16 %v761, %v757
        %v938 = vpack.c.b16 %v762, %v758
        %v939 = vpack.c.b16 %v763, %v759
        %v940 = vpack.c.b16 %v768, %v764
        %v941 = vpack.c.b16 %v769, %v765
        %v942 = vpack.c.b16 %v770, %v766
        %v943 = vpack.c.b16 %v771, %v767
        %v944 = vpack.c.b16 %v776, %v772
        %v945 = vpack.c.b16 %v777, %v773
        %v946 = vpack.c.b16 %v778, %v774
        %v947 = vpack.c.b16 %v779, %v775
        %v948 = vpack.c.b16 %v784, %v780
        %v949 = vpack.c.b16 %v785, %v781
        %v950 = vpack.c.b16 %v786, %v782
        %v951 = vpack.c.b16 %v787, %v783
        %v952 = vpack.c.b16 %v792, %v788
        %v953 = vpack.c.b16 %v793, %v789
        %v954 = vpack.c.b16 %v794, %v790
        %v955 = vpack.c.b16 %v795, %v791
        %v956 = vpack.c.b16 %v800, %v796
        %v957 = vpack.c.b16 %v801, %v797
        %v958 = vpack.c.b16 %v802, %v798
        %v959 = vpack.c.b16 %v803, %v799
        %v960 = vpack.c.b16 %v808, %v804
        %v961 = vpack.c.b16 %v809, %v805
        %v962 = vpack.c.b16 %v810, %v806
        %v963 = vpack.c.b16 %v811, %v807
        %v964 = vpack.c.b16 %v816, %v812
        %v965 = vpack.c.b16 %v817, %v813
        %v966 = vpack.c.b16 %v818, %v814
        %v967 = vpack.c.b16 %v819, %v815
        %v968 = vpack.c.b16 %v824, %v820
        %v969 = vpack.c.b16 %v825, %v821
        %v970 = vpack.c.b16 %v826, %v822
        %v971 = vpack.c.b16 %v827, %v823
        %v972 = vpack.c.b16 %v832, %v828
        %v973 = vpack.c.b16 %v833, %v829
        %v974 = vpack.c.b16 %v834, %v830
        %v975 = vpack.c.b16 %v835, %v831
        %v976 = vpack.c.b16 %v840, %v836
        %v977 = vpack.c.b16 %v841, %v837
        %v978 = vpack.c.b16 %v842, %v838
        %v979 = vpack.c.b16 %v843, %v839
        %v980 = vpack.c.b16 %v848, %v844
        %v981 = vpack.c.b16 %v849, %v845
        %v982 = vpack.c.b16 %v850, %v846
        %v983 = vpack.c.b16 %v851, %v847
        %v984 = vpack.c.b16 %v856, %v852
        %v985 = vpack.c.b16 %v857, %v853
        %v986 = vpack.c.b16 %v858, %v854
        %v987 = vpack.c.b16 %v859, %v855
        %1116 = vmatprep.subr.bf16.mxu0 %v861
        %1117 = vmatpush1.bf16.xpose.msra.mxu0 %v860
        %1118 = vmatprep.subr.bf16.mxu0 %v865
        %1119 = vmatpush1.bf16.xpose.msra.mxu0 %v864
        %1120 = vmatprep.subr.bf16.mxu0 %v869
        %1121 = vmatpush1.bf16.xpose.msra.mxu0 %v868
        %1122 = vmatprep.subr.bf16.mxu0 %v873
        %1123 = vmatpush1.bf16.xpose.msra.mxu0 %v872
        %1124 = vmatprep.subr.bf16.mxu0 %v877
        %1125 = vmatpush1.bf16.xpose.msra.mxu0 %v876
        %1126 = vmatprep.subr.bf16.mxu0 %v881
        %1127 = vmatpush1.bf16.xpose.msra.mxu0 %v880
        %1128 = vmatprep.subr.bf16.mxu0 %v885
        %1129 = vmatpush1.bf16.xpose.msra.mxu0 %v884
        %1130 = vmatprep.subr.bf16.mxu0 %v889
        %1131 = vmatpush1.bf16.xpose.msra.mxu0 %v888
        %1132 = vmatprep.subr.bf16.mxu0 %v893
        %1133 = vmatpush1.bf16.xpose.msra.mxu0 %v892
        %1134 = vmatprep.subr.bf16.mxu0 %v897
        %1135 = vmatpush1.bf16.xpose.msra.mxu0 %v896
        %1136 = vmatprep.subr.bf16.mxu0 %v901
        %1137 = vmatpush1.bf16.xpose.msra.mxu0 %v900
        %1138 = vmatprep.subr.bf16.mxu0 %v905
        %1139 = vmatpush1.bf16.xpose.msra.mxu0 %v904
        %1140 = vmatprep.subr.bf16.mxu0 %v909
        %1141 = vmatpush1.bf16.xpose.msra.mxu0 %v908
        %1142 = vmatprep.subr.bf16.mxu0 %v913
        %1143 = vmatpush1.bf16.xpose.msra.mxu0 %v912
        %1144 = vmatprep.subr.bf16.mxu0 %v917
        %1145 = vmatpush1.bf16.xpose.msra.mxu0 %v916
        %1146 = vmatprep.subr.bf16.mxu0 %v921
        %1147 = vmatpush1.bf16.xpose.msra.mxu0 %v920
        %1148 = vmatprep.mubr.bf16.mxu0 %v469
        %1149 = vmatmul.mubr.bf16.gmra.mrb[0].mxu0 %v468
        %v1150 = vpop.f32.mrb[0].mxu0
        %v1151 = vadd.f32 0.0, %v1150
        %v1152 = vpop.f32.mrb[0].mxu0
        %v1153 = vadd.f32 0.0, %v1152
        %v1154 = vpop.f32.mrb[0].mxu0
        %v1155 = vpop.f32.mrb[0].mxu0
        %1156 = vdwg.mxu0
        %1157 = vmatprep.subr.bf16.mxu0 %v863
        %1158 = vmatpush1.bf16.xpose.msra.mxu0 %v862
        %1159 = vmatprep.subr.bf16.mxu0 %v867
        %1160 = vmatpush1.bf16.xpose.msra.mxu0 %v866
        %1161 = vmatprep.subr.bf16.mxu0 %v871
        %1162 = vmatpush1.bf16.xpose.msra.mxu0 %v870
        %1163 = vmatprep.subr.bf16.mxu0 %v875
        %1164 = vmatpush1.bf16.xpose.msra.mxu0 %v874
        %1165 = vmatprep.subr.bf16.mxu0 %v879
        %1166 = vmatpush1.bf16.xpose.msra.mxu0 %v878
        %1167 = vmatprep.subr.bf16.mxu0 %v883
        %1168 = vmatpush1.bf16.xpose.msra.mxu0 %v882
        %1169 = vmatprep.subr.bf16.mxu0 %v887
        %1170 = vmatpush1.bf16.xpose.msra.mxu0 %v886
        %1171 = vmatprep.subr.bf16.mxu0 %v891
        %1172 = vmatpush1.bf16.xpose.msra.mxu0 %v890
        %1173 = vmatprep.subr.bf16.mxu0 %v895
        %1174 = vmatpush1.bf16.xpose.msra.mxu0 %v894
        %1175 = vmatprep.subr.bf16.mxu0 %v899
        %1176 = vmatpush1.bf16.xpose.msra.mxu0 %v898
        %1177 = vmatprep.subr.bf16.mxu0 %v903
        %1178 = vmatpush1.bf16.xpose.msra.mxu0 %v902
        %1179 = vmatprep.subr.bf16.mxu0 %v907
        %1180 = vmatpush1.bf16.xpose.msra.mxu0 %v906
        %1181 = vmatprep.subr.bf16.mxu0 %v911
        %1182 = vmatpush1.bf16.xpose.msra.mxu0 %v910
        %1183 = vmatprep.subr.bf16.mxu0 %v915
        %1184 = vmatpush1.bf16.xpose.msra.mxu0 %v914
        %1185 = vmatprep.subr.bf16.mxu0 %v919
        %1186 = vmatpush1.bf16.xpose.msra.mxu0 %v918
        %1187 = vmatprep.subr.bf16.mxu0 %v923
        %1188 = vmatpush1.bf16.xpose.msra.mxu0 %v922
        %1189 = vmatprep.mubr.bf16.mxu0 %v471
        %1190 = vmatmul.mubr.bf16.gmra.mrb[0].mxu0 %v470
        %v1191 = vpop.f32.mrb[0].mxu0
        %v1192 = vadd.f32 %v1151, %v1191
        %v1193 = vpop.f32.mrb[0].mxu0
        %v1194 = vadd.f32 %v1153, %v1193
        %v1195 = vpop.f32.mrb[0].mxu0
        %v1196 = vpop.f32.mrb[0].mxu0
        %1197 = vdwg.mxu0
        %1198 = vmatprep.subr.bf16.mxu0 %v925
        %1199 = vmatpush1.bf16.xpose.msra.mxu0 %v924
        %1200 = vmatprep.subr.bf16.mxu0 %v929
        %1201 = vmatpush1.bf16.xpose.msra.mxu0 %v928
        %1202 = vmatprep.subr.bf16.mxu0 %v933
        %1203 = vmatpush1.bf16.xpose.msra.mxu0 %v932
        %1204 = vmatprep.subr.bf16.mxu0 %v937
        %1205 = vmatpush1.bf16.xpose.msra.mxu0 %v936
        %1206 = vmatprep.subr.bf16.mxu0 %v941
        %1207 = vmatpush1.bf16.xpose.msra.mxu0 %v940
        %1208 = vmatprep.subr.bf16.mxu0 %v945
        %1209 = vmatpush1.bf16.xpose.msra.mxu0 %v944
        %1210 = vmatprep.subr.bf16.mxu0 %v949
        %1211 = vmatpush1.bf16.xpose.msra.mxu0 %v948
        %1212 = vmatprep.subr.bf16.mxu0 %v953
        %1213 = vmatpush1.bf16.xpose.msra.mxu0 %v952
        %1214 = vmatprep.subr.bf16.mxu0 %v957
        %1215 = vmatpush1.bf16.xpose.msra.mxu0 %v956
        %1216 = vmatprep.subr.bf16.mxu0 %v961
        %1217 = vmatpush1.bf16.xpose.msra.mxu0 %v960
        %1218 = vmatprep.subr.bf16.mxu0 %v965
        %1219 = vmatpush1.bf16.xpose.msra.mxu0 %v964
        %1220 = vmatprep.subr.bf16.mxu0 %v969
        %1221 = vmatpush1.bf16.xpose.msra.mxu0 %v968
        %1222 = vmatprep.subr.bf16.mxu0 %v973
        %1223 = vmatpush1.bf16.xpose.msra.mxu0 %v972
        %1224 = vmatprep.subr.bf16.mxu0 %v977
        %1225 = vmatpush1.bf16.xpose.msra.mxu0 %v976
        %1226 = vmatprep.subr.bf16.mxu0 %v981
        %1227 = vmatpush1.bf16.xpose.msra.mxu0 %v980
        %1228 = vmatprep.subr.bf16.mxu0 %v985
        %1229 = vmatpush1.bf16.xpose.msra.mxu0 %v984
        %1230 = vmatprep.mubr.bf16.mxu0 %v469
        %1231 = vmatmul.mubr.bf16.gmra.mrb[0].mxu0 %v468
        %v1232 = vpop.f32.mrb[0].mxu0
        %v1233 = vadd.f32 0.0, %v1232
        %v1234 = vpop.f32.mrb[0].mxu0
        %v1235 = vadd.f32 0.0, %v1234
        %v1236 = vpop.f32.mrb[0].mxu0
        %v1237 = vpop.f32.mrb[0].mxu0
        %1238 = vdwg.mxu0
        %1239 = vmatprep.subr.bf16.mxu0 %v927
        %1240 = vmatpush1.bf16.xpose.msra.mxu0 %v926
        %1241 = vmatprep.subr.bf16.mxu0 %v931
        %1242 = vmatpush1.bf16.xpose.msra.mxu0 %v930
        %1243 = vmatprep.subr.bf16.mxu0 %v935
        %1244 = vmatpush1.bf16.xpose.msra.mxu0 %v934
        %1245 = vmatprep.subr.bf16.mxu0 %v939
        %1246 = vmatpush1.bf16.xpose.msra.mxu0 %v938
        %1247 = vmatprep.subr.bf16.mxu0 %v943
        %1248 = vmatpush1.bf16.xpose.msra.mxu0 %v942
        %1249 = vmatprep.subr.bf16.mxu0 %v947
        %1250 = vmatpush1.bf16.xpose.msra.mxu0 %v946
        %1251 = vmatprep.subr.bf16.mxu0 %v951
        %1252 = vmatpush1.bf16.xpose.msra.mxu0 %v950
        %1253 = vmatprep.subr.bf16.mxu0 %v955
        %1254 = vmatpush1.bf16.xpose.msra.mxu0 %v954
        %1255 = vmatprep.subr.bf16.mxu0 %v959
        %1256 = vmatpush1.bf16.xpose.msra.mxu0 %v958
        %1257 = vmatprep.subr.bf16.mxu0 %v963
        %1258 = vmatpush1.bf16.xpose.msra.mxu0 %v962
        %1259 = vmatprep.subr.bf16.mxu0 %v967
        %1260 = vmatpush1.bf16.xpose.msra.mxu0 %v966
        %1261 = vmatprep.subr.bf16.mxu0 %v971
        %1262 = vmatpush1.bf16.xpose.msra.mxu0 %v970
        %1263 = vmatprep.subr.bf16.mxu0 %v975
        %1264 = vmatpush1.bf16.xpose.msra.mxu0 %v974
        %1265 = vmatprep.subr.bf16.mxu0 %v979
        %1266 = vmatpush1.bf16.xpose.msra.mxu0 %v978
        %1267 = vmatprep.subr.bf16.mxu0 %v983
        %1268 = vmatpush1.bf16.xpose.msra.mxu0 %v982
        %1269 = vmatprep.subr.bf16.mxu0 %v987
        %1270 = vmatpush1.bf16.xpose.msra.mxu0 %v986
        %1271 = vmatprep.mubr.bf16.mxu0 %v471
        %1272 = vmatmul.mubr.bf16.gmra.mrb[0].mxu0 %v470
        %v1273 = vpop.f32.mrb[0].mxu0
        %v1274 = vadd.f32 %v1233, %v1273
        %v1275 = vpop.f32.mrb[0].mxu0
        %v1276 = vadd.f32 %v1235, %v1275
        %v1277 = vpop.f32.mrb[0].mxu0
        %v1278 = vpop.f32.mrb[0].mxu0
        %1279 = vdwg.mxu0
        %v1280 = vadd.f32 %v328, %v1192
        %v1281 = vadd.f32 %v329, %v1194
        %v1282 = vadd.f32 %v330, %v1274
        %v1283 = vadd.f32 %v331, %v1276
        %1284 = vst [vmem:[#allocation2] sm:$0xff] %v1280
        %1285 = vst [vmem:[#allocation2 + $0x8] sm:$0xff] %v1281
        %1286 = vst [vmem:[#allocation2 + $0x10] sm:$0xff] %v1282
        %1287 = vst [vmem:[#allocation2 + $0x18] sm:$0xff] %v1283
        // Predicated region
        $region53: #{tpu_custom_call.1} parent=35 // pred_check
          %p1288 = pneg %p320
        $region54: #{tpu_custom_call.1} parent=35 // pred_check_branch
          %1290 = sbr.rel (%p1288) target = $region56
        $region55: #{tpu_custom_call.1} parent=35 // pred_region
          %v1291 = vld [vmem:[#allocation2] sm:$0xff]
          %v1292 = vld [vmem:[#allocation2 + $0x8] sm:$0xff]
          %v1293 = vld [vmem:[#allocation2 + $0x10] sm:$0xff]
          %v1294 = vld [vmem:[#allocation2 + $0x18] sm:$0xff]
          %v1295 = vld [vmem:[#allocation8] sm:$0xff]
          %v1296 = vld [vmem:[%s318] sm:$0xff]
          %v1297 = vsub.f32 0.0, %v1291
          %1299 = vrot.lane.b32.xlu0 %v1297, 64
          %v1300 = vpop.permute.xlu0 %1299
          %1303 = vrot.lane.b32.xlu0 %v1291, 64
          %v1304 = vpop.permute.xlu0 %1303
          %vm1306 = vcmask 523264
          %v1307 = vsel %vm1306, %v1300, %v1304
          %v1308 = vmul.f32 %v1291, %v1295
          %v1309 = vmul.f32 %v1307, %v1296
          %v1310 = vadd.f32 %v1308, %v1309
          %v1311 = vsub.f32 0.0, %v1292
          %1313 = vrot.lane.b32.xlu0 %v1311, 64
          %v1314 = vpop.permute.xlu0 %1313
          %1317 = vrot.lane.b32.xlu0 %v1292, 64
          %v1318 = vpop.permute.xlu0 %1317
          %v1320 = vsel %vm1306, %v1314, %v1318
          %v1321 = vmul.f32 %v1292, %v1295
          %v1322 = vmul.f32 %v1320, %v1296
          %v1323 = vadd.f32 %v1321, %v1322
          %v1324 = vsub.f32 0.0, %v1293
          %1326 = vrot.lane.b32.xlu0 %v1324, 64
          %v1327 = vpop.permute.xlu0 %1326
          %1330 = vrot.lane.b32.xlu0 %v1293, 64
          %v1331 = vpop.permute.xlu0 %1330
          %v1333 = vsel %vm1306, %v1327, %v1331
          %v1334 = vmul.f32 %v1293, %v1295
          %v1335 = vmul.f32 %v1333, %v1296
          %v1336 = vadd.f32 %v1334, %v1335
          %v1337 = vsub.f32 0.0, %v1294
          %1339 = vrot.lane.b32.xlu0 %v1337, 64
          %v1340 = vpop.permute.xlu0 %1339
          %1343 = vrot.lane.b32.xlu0 %v1294, 64
          %v1344 = vpop.permute.xlu0 %1343
          %v1346 = vsel %vm1306, %v1340, %v1344
          %v1347 = vmul.f32 %v1294, %v1295
          %v1348 = vmul.f32 %v1346, %v1296
          %v1349 = vadd.f32 %v1347, %v1348
          %v1350 = vpack.c.bf16 %v1310, %v1310
          %v1351 = vpack.c.bf16 %v1323, %v1323
          %v1352 = vpack.c.bf16 %v1336, %v1336
          %v1353 = vpack.c.bf16 %v1349, %v1349
          %v1358 = vunpack.c.l.b16 %v1350
          %v1359 = vunpack.c.l.b16 %v1351
          %v1360 = vunpack.c.l.b16 %v1352
          %v1361 = vunpack.c.l.b16 %v1353
          %v1362 = vpack.c.b16 %v1359, %v1358
          %v1363 = vpack.c.b16 %v1361, %v1360
          %1366 = vst [vmem:[%s311] sm:$0xff] %v1362
          %1367 = vst [vmem:[%s311 + $0x8] sm:$0xff] %v1363
        $region56: #{tpu_custom_call.1} parent=35 // pred_fallthru
          _
        %s1368 = sand.u32 %s170, 1
        %s1369 = scalar_lea.sflag [#allocation5], %s1368
        %s1370 = sand.u32 %s170, 1
        %s1371 = smul.addr %s1370, 16
        %s1372 = scalar_lea.vmem [#allocation9], %s1371
        // Predicated region
        $region57: #{tpu_custom_call.1} parent=35 // pred_check
          %p1373 = pneg %p180
        $region58: #{tpu_custom_call.1} parent=35 // pred_check_branch
          %1375 = sbr.rel (%p1373) target = $region60
        $region59: #{tpu_custom_call.1} parent=35 // pred_region
          %s1376 = smul.u32 4, %s30
          %s1378 = ssub.s32 256, 256
          %1379 = vsyncadd %s1369, %s1378
          %s1380 = smul.addr %s29, 4
          %s1381 = sadd.s32 %s1376, %s1380
          %s1382 = smul.addr %s28, 4
          %s1383 = sadd.s32 %s1381, %s1382
          %s1384 = smul.addr %s1383, 64
          %s1385 = scalar_lea.hbm %s4, %s1384
          %s1387 = sshll.u32 %s1372, 4
          %s1388 = int_to_ptr.vmem [resolvable:$true] %s1387
          %1390 = dma.vmem_to_hbm [thread:$0]  %s1388, 256, %s1385, %s1369
        $region60: #{tpu_custom_call.1} parent=35 // pred_fallthru
          _
      $region36: #{tpu_custom_call.1} parent=5 // pred_fallthru
        _
      %p1391 = scmp.le.s32.totalorder 2, %s17
      // Predicated region
      $region61: #{tpu_custom_call.1} parent=5 // pred_check
        %p1392 = pneg %p1391
      $region62: #{tpu_custom_call.1} parent=5 // pred_check_branch
        %1394 = sbr.rel (%p1392) target = $region64
      $region63: #{tpu_custom_call.1} parent=5 // pred_region
        %s1395 = ssub.s32 %s17, 2
        // Predicated region
        $region65: #{tpu_custom_call.1} parent=63 // pred_check
          %p1396 = pneg %p186
        $region66: #{tpu_custom_call.1} parent=63 // pred_check_branch
          %1398 = sbr.rel (%p1396) target = $region68
        $region67: #{tpu_custom_call.1} parent=63 // pred_region
          %s1399 = sand.u32 %s171, 1
          %s1400 = scalar_lea.sflag [#allocation5], %s1399
          %s1401 = sand.u32 %s171, 1
          %s1402 = smul.addr %s1401, 16
          %s1403 = scalar_lea.vmem [#allocation9], %s1402
          %1404 = dma.done %s1400, 256
        $region68: #{tpu_custom_call.1} parent=63 // pred_fallthru
          _
      $region64: #{tpu_custom_call.1} parent=5 // pred_fallthru
        _
    $region6: #{tpu_custom_call.1} parent=1 // loop_footer
      %s21 = sadd.s32 1, %s17
    $region7: #{tpu_custom_call.1} parent=1 // loop_footer_branch
      %16 = sbr.rel target = $region3
    $region8: #{tpu_custom_call.1} parent=1 // loop_exit
      _
    %1405 = vsyncpa [#allocation4], 1
    %s1406 = scalar_lea.sflag [#allocation4], 1
    %1407 = vsyncpa %s1406, 1
    %1408 = vsyncpa [#allocation7], 1
    %1409 = vsyncpa [#allocation5], 1
    %s1410 = scalar_lea.sflag [#allocation5], 1
    %1411 = vsyncpa %s1410, 1

</llo_original>
